<compile_context>
chip_gen: v7x
topology: tpu7x:2x2x1
jax: 0.10.0
libtpu: 0.0.40
codegen_flags: <defaults>
</compile_context>

<pallas_src>
import jax
import jax.numpy as jnp
from jax.experimental import pallas as pl
from jax.experimental.pallas import tpu as pltpu

EPS = 1e-5  # PyTorch BatchNorm2d default


# ----------------------------------------------------------------------------
# Kernels
# ----------------------------------------------------------------------------
def _conv1x1_stats_kernel(x_ref, w_ref, y_ref, s_ref, q_ref):
    # x_ref: (1, H, W, Cin); w_ref: (Cin, Cout)
    # y_ref: (1, H, W, Cout); s_ref/q_ref: (1, Cout) accumulated over the grid.
    @pl.when(pl.program_id(0) == 0)
    def _():
        s_ref[...] = jnp.zeros_like(s_ref)
        q_ref[...] = jnp.zeros_like(q_ref)

    _, H, W, Cin = x_ref.shape
    Cout = w_ref.shape[1]
    y = jnp.dot(x_ref[...].reshape(H * W, Cin), w_ref[...],
                preferred_element_type=jnp.float32)          # (H*W, Cout), MXU
    y_ref[...] = y.reshape(1, H, W, Cout)
    s_ref[...] += jnp.sum(y, axis=0, keepdims=True)
    q_ref[...] += jnp.sum(y * y, axis=0, keepdims=True)


def _bnrelu_conv3x3_stats_kernel(y_ref, sc_ref, sh_ref, w_ref,
                                 o_ref, s_ref, q_ref, pad_ref, col_ref):
    # y_ref : (1, H, W, C)   pre-BN output of the previous conv
    # sc/sh : (1, C)         folded BN scale/shift of the previous BN
    # w_ref : (9*C, Cout)    3x3 weights flattened (kh, kw, cin) -> rows
    # o_ref : (1, H, W, Cout)
    # s/q   : (1, Cout)      per-channel sum / sum-of-squares of o (accumulated)
    # pad_ref: VMEM (H+2, W+2, C) zero-padded activation (border stays 0)
    # col_ref: VMEM (H*W, 9*C)    im2col patch
    _, H, W, C = y_ref.shape
    Cout = w_ref.shape[1]

    @pl.when(pl.program_id(0) == 0)
    def _():
        s_ref[...] = jnp.zeros_like(s_ref)
        q_ref[...] = jnp.zeros_like(q_ref)
        pad_ref[...] = jnp.zeros_like(pad_ref)   # border zeros persist

    # Fused BN + ReLU of the previous layer's conv output (VPU), then write the
    # interior of the padded scratch.  Zero padding of the *activation* is what
    # PyTorch's Conv2d(padding=1) sees, so the border must stay exactly 0.
    a = jnp.maximum(y_ref[0] * sc_ref[...] + sh_ref[...], 0.0)   # (H, W, C)
    pad_ref[1:H + 1, 1:W + 1, :] = a

    # im2col: 9 shifted windows -> (H*W, 9*C), then ONE MXU matmul (K = 9*C)
    # instead of 9 tiny K=C matmuls.
    for kh in range(3):
        for kw in range(3):
            idx = (kh * 3 + kw) * C
            col_ref[:, idx:idx + C] = (
                pad_ref[kh:kh + H, kw:kw + W, :].reshape(H * W, C))
    y = jnp.dot(col_ref[...], w_ref[...], preferred_element_type=jnp.float32)

    o_ref[...] = y.reshape(1, H, W, Cout)
    s_ref[...] += jnp.sum(y, axis=0, keepdims=True)
    q_ref[...] += jnp.sum(y * y, axis=0, keepdims=True)


def _residual_epilogue_kernel(y3_ref, y1_ref, sc3_ref, sh3_ref,
                              sc1_ref, sh1_ref, o_ref):
    # out = relu( bn3(y3) + relu(bn1(y1)) )
    res = jnp.maximum(y1_ref[...] * sc1_ref[...] + sh1_ref[...], 0.0)
    bn3 = y3_ref[...] * sc3_ref[...] + sh3_ref[...]
    o_ref[...] = jnp.maximum(bn3 + res, 0.0)


# ----------------------------------------------------------------------------
# Pallas wrappers
# ----------------------------------------------------------------------------
def conv1x1_stats(x, w):
    """1x1 conv (no bias) + per-channel sum / sumsq.  x: (N,H,W,Cin)."""
    N, H, W, Cin = x.shape
    Cout = w.shape[1]
    return pl.pallas_call(
        _conv1x1_stats_kernel,
        out_shape=(jax.ShapeDtypeStruct((N, H, W, Cout), jnp.float32),
                   jax.ShapeDtypeStruct((1, Cout), jnp.float32),
                   jax.ShapeDtypeStruct((1, Cout), jnp.float32)),
        grid=(N,),
        in_specs=[pl.BlockSpec((1, H, W, Cin), lambda n: (n, 0, 0, 0)),
                  pl.BlockSpec((Cin, Cout), lambda n: (0, 0))],
        out_specs=(pl.BlockSpec((1, H, W, Cout), lambda n: (n, 0, 0, 0)),
                   pl.BlockSpec((1, Cout), lambda n: (0, 0)),
                   pl.BlockSpec((1, Cout), lambda n: (0, 0))),
        compiler_params=pltpu.CompilerParams(
            dimension_semantics=("arbitrary",)),   # stats accumulate over N
    )(x, w)


def bnrelu_conv3x3_stats(y_in, scale, shift, w):
    """relu(y_in*scale+shift) -> 3x3 conv (pad=1, no bias) -> (y, sum, sumsq)."""
    N, H, W, C = y_in.shape
    Cout = w.shape[-1]
    w_flat = w.reshape(9 * C, Cout)    # rows ordered (kh, kw, cin) — tiny, once
    return pl.pallas_call(
        _bnrelu_conv3x3_stats_kernel,
        out_shape=(jax.ShapeDtypeStruct((N, H, W, Cout), jnp.float32),
                   jax.ShapeDtypeStruct((1, Cout), jnp.float32),
                   jax.ShapeDtypeStruct((1, Cout), jnp.float32)),
        grid=(N,),
        in_specs=[pl.BlockSpec((1, H, W, C), lambda n: (n, 0, 0, 0)),
                  pl.BlockSpec((1, C), lambda n: (0, 0)),
                  pl.BlockSpec((1, C), lambda n: (0, 0)),
                  pl.BlockSpec((9 * C, Cout), lambda n: (0, 0))],
        out_specs=(pl.BlockSpec((1, H, W, Cout), lambda n: (n, 0, 0, 0)),
                   pl.BlockSpec((1, Cout), lambda n: (0, 0)),
                   pl.BlockSpec((1, Cout), lambda n: (0, 0))),
        scratch_shapes=[pltpu.VMEM((H + 2, W + 2, C), jnp.float32),
                        pltpu.VMEM((H * W, 9 * C), jnp.float32)],
        compiler_params=pltpu.CompilerParams(
            dimension_semantics=("arbitrary",)),
    )(y_in, scale, shift, w_flat)


def residual_epilogue(y3, y1, sc3, sh3, sc1, sh1):
    """relu( bn3(y3) + relu(bn1(y1)) ) in one fused pass."""
    N, H, W, C = y3.shape
    img = pl.BlockSpec((1, H, W, C), lambda n: (n, 0, 0, 0))
    vec = pl.BlockSpec((1, C), lambda n: (0, 0))
    return pl.pallas_call(
        _residual_epilogue_kernel,
        out_shape=jax.ShapeDtypeStruct((N, H, W, C), jnp.float32),
        grid=(N,),
        in_specs=[img, img, vec, vec, vec, vec],
        out_specs=img,
        compiler_params=pltpu.CompilerParams(
            dimension_semantics=("parallel",)),
    )(y3, y1, sc3, sh3, sc1, sh1)


# ----------------------------------------------------------------------------
# TransBottleneck forward (NCHW in / NCHW out, like the PyTorch module)
# ----------------------------------------------------------------------------
def _bn_fold(s, q, gamma, beta, cnt):
    """Fold train-mode BN (batch stats, biased var) into scale/shift (1, C)."""
    mean = s[0] / cnt
    # NOTE: E[x^2]-E[x]^2 can cancel for large means; activations here are
    # zero-ish mean and f32, and we clamp to >=0 before rsqrt.
    var = jnp.maximum(q[0] / cnt - mean * mean, 0.0)
    scale = gamma * jax.lax.rsqrt(var + EPS)
    shift = beta - mean * scale
    C = scale.shape[0]
    return scale.reshape(1, C), shift.reshape(1, C)


def trans_bottleneck_forward(x_nchw, params):
    """TransBottleneck(inplanes, planes, stride=1, upsample=None).forward."""
    # TODO(synk): the ConvTranspose2d/upsample branch (stride != 1 with an
    # upsample module) is not implemented; this is the default-config path.
    x = jnp.transpose(x_nchw, (0, 2, 3, 1))                 # NCHW -> NHWC
    N, H, W, _ = x.shape

    # conv1 (1x1) + bn1 batch statistics
    y1, s1, q1 = conv1x1_stats(x, params["w1"])
    sc1, sh1 = _bn_fold(s1, q1, params["g1"], params["be1"], float(N * H * W))

    # relu(bn1(y1)) fused into conv2 (3x3) + bn2 batch statistics
    y2, s2, q2 = bnrelu_conv3x3_stats(y1, sc1, sh1, params["w2"])
    sc2, sh2 = _bn_fold(s2, q2, params["g2"], params["be2"], float(N * H * W))

    # relu(bn2(y2)) fused into conv3 (3x3) + bn3 batch statistics
    y3, s3, q3 = bnrelu_conv3x3_stats(y2, sc2, sh2, params["w3"])
    sc3, sh3 = _bn_fold(s3, q3, params["g3"], params["be3"], float(N * H * W))

    # bn3 + residual (recomputed from y1, never materialized) + relu
    out = residual_epilogue(y3, y1, sc3, sh3, sc1, sh1)
    return jnp.transpose(out, (0, 3, 1, 2))                 # NHWC -> NCHW


# ----------------------------------------------------------------------------
# Plain-JAX reference (numerical sanity check)
# ----------------------------------------------------------------------------
def reference_forward(x_nchw, params):
    hi = jax.lax.Precision.HIGHEST

    def bn(y, gamma, beta):
        mean = jnp.mean(y, axis=(0, 1, 2))
        var = jnp.mean((y - mean) ** 2, axis=(0, 1, 2))     # biased, train mode
        return (y - mean) * jax.lax.rsqrt(var + EPS) * gamma + beta

    def conv3x3(y, w):
        return jax.lax.conv_general_dilated(
            y, w, window_strides=(1, 1), padding=((1, 1), (1, 1)),
            dimension_numbers=("NHWC", "HWIO", "NHWC"), precision=hi)

    x = jnp.transpose(x_nchw, (0, 2, 3, 1))
    out = jnp.einsum("nhwc,cd->nhwd", x, params["w1"], precision=hi)
    out = jnp.maximum(bn(out, params["g1"], params["be1"]), 0.0)
    residual = out
    out = jnp.maximum(bn(conv3x3(out, params["w2"]), params["g2"], params["be2"]), 0.0)
    out = bn(conv3x3(out, params["w3"]), params["g3"], params["be3"])
    out = jnp.maximum(out + residual, 0.0)
    return jnp.transpose(out, (0, 3, 1, 2))


def init_params(key, inplanes, planes):
    ks = jax.random.split(key, 3)

    def xavier(k, shape, fan_in, fan_out):
        bound = jnp.sqrt(6.0 / (fan_in + fan_out))
        return jax.random.uniform(k, shape, jnp.float32, -bound, bound)

    ones = jnp.ones((planes,), jnp.float32)
    zeros = jnp.zeros((planes,), jnp.float32)
    return dict(
        w1=xavier(ks[0], (inplanes, planes), inplanes, planes),          # 1x1 (Cin,Cout)
        w2=xavier(ks[1], (3, 3, planes, planes), 9 * planes, 9 * planes),  # HWIO
        w3=xavier(ks[2], (3, 3, planes, planes), 9 * planes, 9 * planes),  # HWIO
        g1=ones, be1=zeros,        # PyTorch init: BN weight=1, bias=0
        g2=ones, be2=zeros,
        g3=ones, be3=zeros,
    )


if __name__ == "__main__":
    key = jax.random.PRNGKey(0)
    k_x, k_p = jax.random.split(key)

    N, INPLANES, PLANES, H, W = 2, 4, 8, 16, 16
    x = jax.random.normal(k_x, (N, INPLANES, H, W), jnp.float32)   # NCHW input
    params = init_params(k_p, INPLANES, PLANES)

    out = jax.block_until_ready(trans_bottleneck_forward(x, params))
    assert out.shape == (N, PLANES, H, W), out.shape

    ref = reference_forward(x, params)
    err = float(jnp.max(jnp.abs(out - ref)))
    assert err < 5e-2, f"mismatch vs reference: max abs err {err}"

    print("KERNEL_OK")
</pallas_src>

<mosaic_0001>
module attributes {stable_mosaic.version = 11 : i64} {
  func.func @_conv1x1_stats_kernel(%arg0: i32, %arg1: memref<1x16x16x4xf32, #tpu.memory_space<vmem>>, %arg2: memref<4x8xf32, #tpu.memory_space<vmem>>, %arg3: memref<1x16x16x8xf32, #tpu.memory_space<vmem>>, %arg4: memref<1x8xf32, #tpu.memory_space<vmem>>, %arg5: memref<1x8xf32, #tpu.memory_space<vmem>>) attributes {dimension_semantics = [#tpu.dimension_semantics<arbitrary>], iteration_bounds = array<i64: 2>, scalar_prefetch = 0 : i64, scratch_operands = 0 : i64, tpu.core_type = #tpu.core_type<tc>, window_params = [{transform_indices = @transform_0, window_bounds = array<i64: 1, 16, 16, 4>}, {pipeline_mode = #tpu.pipeline_mode<synchronous>, transform_indices = @transform_1, window_bounds = array<i64: 4, 8>}, {transform_indices = @transform_2, window_bounds = array<i64: 1, 16, 16, 8>}, {pipeline_mode = #tpu.pipeline_mode<synchronous>, transform_indices = @transform_3, window_bounds = array<i64: 1, 8>}, {pipeline_mode = #tpu.pipeline_mode<synchronous>, transform_indices = @transform_4, window_bounds = array<i64: 1, 8>}]} {
    %c0_i32 = arith.constant 0 : i32
    %0 = arith.cmpi eq, %arg0, %c0_i32 : i32
    %1 = arith.extui %0 : i1 to i32
    %c0_i32_0 = arith.constant 0 : i32
    %2 = arith.cmpi ne, %1, %c0_i32_0 : i32
    scf.if %2 {
      %cst_20 = arith.constant 0.000000e+00 : f32
      %20 = vector.broadcast %cst_20 : f32 to vector<1x8xf32>
      %c0_21 = arith.constant 0 : index
      %c0_22 = arith.constant 0 : index
      %21 = vector.load %arg4[%c0_21, %c0_22] : memref<1x8xf32, #tpu.memory_space<vmem>>, vector<1x8xf32>
      tpu.vector_store %arg4[%c0_21, %c0_22], %20 {strides = array<i32>} : memref<1x8xf32, #tpu.memory_space<vmem>>, vector<1x8xf32>,
      %cst_23 = arith.constant 0.000000e+00 : f32
      %22 = vector.broadcast %cst_23 : f32 to vector<1x8xf32>
      %c0_24 = arith.constant 0 : index
      %c0_25 = arith.constant 0 : index
      %23 = vector.load %arg5[%c0_24, %c0_25] : memref<1x8xf32, #tpu.memory_space<vmem>>, vector<1x8xf32>
      tpu.vector_store %arg5[%c0_24, %c0_25], %22 {strides = array<i32>} : memref<1x8xf32, #tpu.memory_space<vmem>>, vector<1x8xf32>,
    } else {
    }
    %c0 = arith.constant 0 : index
    %c0_1 = arith.constant 0 : index
    %c0_2 = arith.constant 0 : index
    %c0_3 = arith.constant 0 : index
    %3 = vector.load %arg1[%c0, %c0_1, %c0_2, %c0_3] : memref<1x16x16x4xf32, #tpu.memory_space<vmem>>, vector<1x16x16x4xf32>
    %4 = vector.shape_cast %3 : vector<1x16x16x4xf32> to vector<256x4xf32>
    %c0_4 = arith.constant 0 : index
    %c0_5 = arith.constant 0 : index
    %5 = vector.load %arg2[%c0_4, %c0_5] : memref<4x8xf32, #tpu.memory_space<vmem>>, vector<4x8xf32>
    %cst = arith.constant dense<0.000000e+00> : vector<256x8xf32>
    %6 = tpu.matmul %4, %5, %cst {dimension_numbers = #tpu.dot_dimension_numbers<[1], [0], [0], [1], [0, 0, 1, 1], [], []>} : vector<256x4xf32>, vector<4x8xf32>, vector<256x8xf32> -> vector<256x8xf32>
    %7 = vector.shape_cast %6 : vector<256x8xf32> to vector<1x16x16x8xf32>
    %c0_6 = arith.constant 0 : index
    %c0_7 = arith.constant 0 : index
    %c0_8 = arith.constant 0 : index
    %c0_9 = arith.constant 0 : index
    %8 = vector.load %arg3[%c0_6, %c0_7, %c0_8, %c0_9] : memref<1x16x16x8xf32, #tpu.memory_space<vmem>>, vector<1x16x16x8xf32>
    tpu.vector_store %arg3[%c0_6, %c0_7, %c0_8, %c0_9], %7 {strides = array<i32>} : memref<1x16x16x8xf32, #tpu.memory_space<vmem>>, vector<1x16x16x8xf32>,
    %c0_10 = arith.constant 0 : index
    %c0_11 = arith.constant 0 : index
    %9 = vector.load %arg4[%c0_10, %c0_11] : memref<1x8xf32, #tpu.memory_space<vmem>>, vector<1x8xf32>
    %cst_12 = arith.constant dense<0.000000e+00> : vector<8xf32>
    %10 = vector.multi_reduction <add>, %6, %cst_12 [0] : vector<256x8xf32> to vector<8xf32>
    %11 = vector.shape_cast %10 : vector<8xf32> to vector<1x8xf32>
    %12 = arith.addf %9, %11 : vector<1x8xf32>
    %c0_13 = arith.constant 0 : index
    %c0_14 = arith.constant 0 : index
    %13 = vector.load %arg4[%c0_13, %c0_14] : memref<1x8xf32, #tpu.memory_space<vmem>>, vector<1x8xf32>
    tpu.vector_store %arg4[%c0_13, %c0_14], %12 {strides = array<i32>} : memref<1x8xf32, #tpu.memory_space<vmem>>, vector<1x8xf32>,
    %c0_15 = arith.constant 0 : index
    %c0_16 = arith.constant 0 : index
    %14 = vector.load %arg5[%c0_15, %c0_16] : memref<1x8xf32, #tpu.memory_space<vmem>>, vector<1x8xf32>
    %15 = arith.mulf %6, %6 : vector<256x8xf32>
    %cst_17 = arith.constant dense<0.000000e+00> : vector<8xf32>
    %16 = vector.multi_reduction <add>, %15, %cst_17 [0] : vector<256x8xf32> to vector<8xf32>
    %17 = vector.shape_cast %16 : vector<8xf32> to vector<1x8xf32>
    %18 = arith.addf %14, %17 : vector<1x8xf32>
    %c0_18 = arith.constant 0 : index
    %c0_19 = arith.constant 0 : index
    %19 = vector.load %arg5[%c0_18, %c0_19] : memref<1x8xf32, #tpu.memory_space<vmem>>, vector<1x8xf32>
    tpu.vector_store %arg5[%c0_18, %c0_19], %18 {strides = array<i32>} : memref<1x8xf32, #tpu.memory_space<vmem>>, vector<1x8xf32>,
    return
  }
  func.func @transform_0(%arg0: i32) -> (i32, i32, i32, i32) {
    %c0_i32 = arith.constant 0 : i32
    %c0_i32_0 = arith.constant 0 : i32
    %c0_i32_1 = arith.constant 0 : i32
    %c0_i32_2 = arith.constant 0 : i32
    return %arg0, %c0_i32, %c0_i32_0, %c0_i32_1 : i32, i32, i32, i32
  }
  func.func @transform_1(%arg0: i32) -> (i32, i32) {
    %c0_i32 = arith.constant 0 : i32
    %c0_i32_0 = arith.constant 0 : i32
    %c0_i32_1 = arith.constant 0 : i32
    return %c0_i32, %c0_i32_0 : i32, i32
  }
  func.func @transform_2(%arg0: i32) -> (i32, i32, i32, i32) {
    %c0_i32 = arith.constant 0 : i32
    %c0_i32_0 = arith.constant 0 : i32
    %c0_i32_1 = arith.constant 0 : i32
    %c0_i32_2 = arith.constant 0 : i32
    return %arg0, %c0_i32, %c0_i32_0, %c0_i32_1 : i32, i32, i32, i32
  }
  func.func @transform_3(%arg0: i32) -> (i32, i32) {
    %c0_i32 = arith.constant 0 : i32
    %c0_i32_0 = arith.constant 0 : i32
    %c0_i32_1 = arith.constant 0 : i32
    return %c0_i32, %c0_i32_0 : i32, i32
  }
  func.func @transform_4(%arg0: i32) -> (i32, i32) {
    %c0_i32 = arith.constant 0 : i32
    %c0_i32_0 = arith.constant 0 : i32
    %c0_i32_1 = arith.constant 0 : i32
    return %c0_i32, %c0_i32_0 : i32, i32
  }
}

</mosaic_0001>

<llo_original>
// kernel: tpu_custom_call.1
$region0: #{tpu_custom_call.1}
  #allocation0 [shape = 'u32[]', space=smem, size = 0x4, offset = 0x4, fixed_abs, tag = 'smem constant byte address 0x4 - core index']
  #allocation1 [shape = 'u32[144,128]{1,0:T(1,128)}', space=vmem, size = 0x12000, scoped, tag = 'internal scratch']
  %s0 = inlined_call_operand.vmem [shape: f32[2,16,16,4], index: 0, kind: input, shape index: {}]
  %s1 = inlined_call_operand.vmem [shape: f32[4,8], index: 1, kind: input, shape index: {}]
  %s2 = inlined_call_operand.vmem [shape: f32[2,16,16,8], index: 2, kind: output, shape index: {0}]
  %s3 = inlined_call_operand.hbm [shape: f32[1,8], index: 3, kind: output, shape index: {1}]
  %s4 = inlined_call_operand.hbm [shape: f32[1,8], index: 4, kind: output, shape index: {2}]
  %5 = xla_tuple %s2, %s3, %s4
  %s6 = sld [smem:[#allocation0]]
  $region61: #{tpu_custom_call.1} parent=0
    _
  %s8 = ssub.s32 1, %s6
  %s9 = scalar_select 0, %s8, %s6
  $region1: #{tpu_custom_call.1} parent=0
    #allocation2 [shape = 'u8[512]{0}', space=vmem, size = 0x400, scoped, tag = 'output window, operand 1, single buffered']
    #allocation3 [shape = 's32[2]{0}', space=sflag, size = 0x8, scoped, tag = 'scoped memory for tpu_custom_call.1']
    #allocation4 [shape = 'u8[512]{0}', space=vmem, size = 0x400, scoped, tag = 'output window, operand 2, single buffered']
    #allocation5 [shape = 's32[1]{0}', space=sflag, size = 0x4, scoped, tag = 'scoped memory for tpu_custom_call.1']
    %10 = vsyncpa [#allocation3], 0
    %11 = vsyncpa [#allocation5], 0
    loop: start=0, step=1, limit=4
    $region2: #{tpu_custom_call.1} parent=1 // loop_pre_header
      _
    $region3: #{tpu_custom_call.1} parent=1 // loop_header
      %s13 = sphi 0, %s17
      %p14 = scmp.ge.s32.totalorder %s13, 4
      %s23 = sphi 0, %s25
      %s26 = sphi 0, %s23
      %s27 = sphi 0, %s26
      %s43 = sphi 0, %s27
      %s47 = sphi 0, %s47
      %s49 = sphi 0, %s47
      %s50 = sphi 0, %s49
      %s64 = sphi 0, %s50
      %s70 = sphi 0, %s72
      %s73 = sphi 0, %s70
      %s74 = sphi 0, %s73
      %s90 = sphi 0, %s74
      %s94 = sphi 0, %s94
      %s96 = sphi 0, %s94
      %s97 = sphi 0, %s96
      %s111 = sphi 0, %s97
      %s115 = sphi 0, %s115
      %s117 = sphi 0, %s115
      %s118 = sphi 0, %s117
      %s132 = sphi 0, %s118
    $region4: #{tpu_custom_call.1} parent=1 // loop_header_branch
      %16 = sbr.rel (%p14) target = $region8
    $region5: #{tpu_custom_call.1} parent=1 // loop_body
      %s18 = ssub.s32 %s13, 1
      %s19 = ssub.s32 %s13, 2
      %s20 = sadd.s32 %s13, 1
      %s21 = ssub.s32 %s13, %s20
      %p22 = scmp.eq.s32.totalorder %s21, 0
      %s24 = sadd.s32 %s23, 1
      %s25 = scalar_select %p22, %s23, %s24
      %p28 = pneg %p22
      %p29 = scmp.eq.s32.totalorder %s13, 1
      %p30 = por %p28, %p29
      %p31 = scmp.ne.s32.totalorder %s23, %s26
      %p32 = scmp.eq.s32.totalorder %s13, 0
      %p33 = por %p31, %p32
      %p34 = scmp.ne.s32.totalorder %s23, %s26
      %p35 = scmp.eq.s32.totalorder %s18, 1
      %p36 = por %p34, %p35
      %p37 = scmp.ne.s32.totalorder %s26, %s27
      %p38 = scmp.eq.s32.totalorder %s18, 0
      %p39 = por %p37, %p38
      %p40 = scmp.ne.s32.totalorder %s26, %s27
      %p41 = scmp.eq.s32.totalorder %s19, 1
      %p42 = por %p40, %p41
      %p44 = scmp.ne.s32.totalorder %s27, %s43
      %p45 = scmp.eq.s32.totalorder %s19, 0
      %p46 = por %p44, %p45
      %s48 = sadd.s32 %s47, 1
      %p51 = scmp.eq.s32.totalorder %s13, 1
      %p52 = scmp.ne.s32.totalorder %s47, %s49
      %p53 = scmp.eq.s32.totalorder %s13, 0
      %p54 = por %p52, %p53
      %p55 = scmp.ne.s32.totalorder %s47, %s49
      %p56 = scmp.eq.s32.totalorder %s18, 1
      %p57 = por %p55, %p56
      %p58 = scmp.ne.s32.totalorder %s49, %s50
      %p59 = scmp.eq.s32.totalorder %s18, 0
      %p60 = por %p58, %p59
      %p61 = scmp.ne.s32.totalorder %s49, %s50
      %p62 = scmp.eq.s32.totalorder %s19, 1
      %p63 = por %p61, %p62
      %p65 = scmp.ne.s32.totalorder %s50, %s64
      %p66 = scmp.eq.s32.totalorder %s19, 0
      %p67 = por %p65, %p66
      %s68 = ssub.s32 %s13, %s20
      %p69 = scmp.eq.s32.totalorder %s68, 0
      %s71 = sadd.s32 %s70, 1
      %s72 = scalar_select %p69, %s70, %s71
      %p75 = pneg %p69
      %p76 = scmp.eq.s32.totalorder %s13, 1
      %p77 = por %p75, %p76
      %p78 = scmp.ne.s32.totalorder %s70, %s73
      %p79 = scmp.eq.s32.totalorder %s13, 0
      %p80 = por %p78, %p79
      %p81 = scmp.ne.s32.totalorder %s70, %s73
      %p82 = scmp.eq.s32.totalorder %s18, 1
      %p83 = por %p81, %p82
      %p84 = scmp.ne.s32.totalorder %s73, %s74
      %p85 = scmp.eq.s32.totalorder %s18, 0
      %p86 = por %p84, %p85
      %p87 = scmp.ne.s32.totalorder %s73, %s74
      %p88 = scmp.eq.s32.totalorder %s19, 1
      %p89 = por %p87, %p88
      %p91 = scmp.ne.s32.totalorder %s74, %s90
      %p92 = scmp.eq.s32.totalorder %s19, 0
      %p93 = por %p91, %p92
      %s95 = sadd.s32 %s94, 1
      %p98 = scmp.eq.s32.totalorder %s13, 1
      %p99 = scmp.ne.s32.totalorder %s94, %s96
      %p100 = scmp.eq.s32.totalorder %s13, 0
      %p101 = por %p99, %p100
      %p102 = scmp.ne.s32.totalorder %s94, %s96
      %p103 = scmp.eq.s32.totalorder %s18, 1
      %p104 = por %p102, %p103
      %p105 = scmp.ne.s32.totalorder %s96, %s97
      %p106 = scmp.eq.s32.totalorder %s18, 0
      %p107 = por %p105, %p106
      %p108 = scmp.ne.s32.totalorder %s96, %s97
      %p109 = scmp.eq.s32.totalorder %s19, 1
      %p110 = por %p108, %p109
      %p112 = scmp.ne.s32.totalorder %s97, %s111
      %p113 = scmp.eq.s32.totalorder %s19, 0
      %p114 = por %p112, %p113
      %s116 = sadd.s32 %s115, 1
      %p119 = scmp.eq.s32.totalorder %s13, 1
      %p120 = scmp.ne.s32.totalorder %s115, %s117
      %p121 = scmp.eq.s32.totalorder %s13, 0
      %p122 = por %p120, %p121
      %p123 = scmp.ne.s32.totalorder %s115, %s117
      %p124 = scmp.eq.s32.totalorder %s18, 1
      %p125 = por %p123, %p124
      %p126 = scmp.ne.s32.totalorder %s117, %s118
      %p127 = scmp.eq.s32.totalorder %s18, 0
      %p128 = por %p126, %p127
      %p129 = scmp.ne.s32.totalorder %s117, %s118
      %p130 = scmp.eq.s32.totalorder %s19, 1
      %p131 = por %p129, %p130
      %p133 = scmp.ne.s32.totalorder %s118, %s132
      %p134 = scmp.eq.s32.totalorder %s19, 0
      %p135 = por %p133, %p134
      %p136 = scmp.le.s32.totalorder 1, %s13
      %p137 = scmp.lt.s32.totalorder %s13, 3
      %p138 = pnand %p136, %p137
      %p139 = pneg %p138
      // Predicated region
      $region9: #{tpu_custom_call.1} parent=5 // pred_check
        _
      $region10: #{tpu_custom_call.1} parent=5 // pred_check_branch
        %141 = sbr.rel (%p138) target = $region12
      $region11: #{tpu_custom_call.1} parent=5 // pred_region
        %s142 = ssub.s32 %s13, 1
        // Predicated region
        $region13: #{tpu_custom_call.1} parent=11 // pred_check
          %p143 = pneg %p60
        $region14: #{tpu_custom_call.1} parent=11 // pred_check_branch
          %145 = sbr.rel (%p143) target = $region16
        $region15: #{tpu_custom_call.1} parent=11 // pred_region
          _
        $region16: #{tpu_custom_call.1} parent=11 // pred_fallthru
          _
      $region12: #{tpu_custom_call.1} parent=5 // pred_fallthru
        _
      %p146 = scmp.lt.s32.totalorder %s13, 2
      // Predicated region
      $region17: #{tpu_custom_call.1} parent=5 // pred_check
        %p147 = pneg %p146
      $region18: #{tpu_custom_call.1} parent=5 // pred_check_branch
        %149 = sbr.rel (%p147) target = $region20
      $region19: #{tpu_custom_call.1} parent=5 // pred_region
        // Predicated region
        $region21: #{tpu_custom_call.1} parent=19 // pred_check
          %p150 = pneg %p33
        $region22: #{tpu_custom_call.1} parent=19 // pred_check_branch
          %152 = sbr.rel (%p150) target = $region24
        $region23: #{tpu_custom_call.1} parent=19 // pred_region
          %p153 = scmp.lt.s32.totalorder %s13, 1
          %s154 = scalar_select %p153, %s13, 1
          %s155 = smul.addr %s154, 32
          %s156 = smul.addr %s155, 8
          %s157 = scalar_lea.vmem %s0, %s156
        $region24: #{tpu_custom_call.1} parent=19 // pred_fallthru
          _
      $region20: #{tpu_custom_call.1} parent=5 // pred_fallthru
        _
      %p158 = scmp.le.s32.totalorder 1, %s13
      %p159 = scmp.lt.s32.totalorder %s13, 3
      %p160 = pnand %p158, %p159
      %p161 = pneg %p160
      // Predicated region
      $region25: #{tpu_custom_call.1} parent=5 // pred_check
        _
      $region26: #{tpu_custom_call.1} parent=5 // pred_check_branch
        %163 = sbr.rel (%p160) target = $region28
      $region27: #{tpu_custom_call.1} parent=5 // pred_region
        %s164 = ssub.s32 %s13, 1
        %p165 = scmp.lt.s32.totalorder %s18, 1
        %s166 = scalar_select %p165, %s18, 1
        %s167 = smul.addr %s166, 32
        %s168 = smul.addr %s167, 8
        %s169 = scalar_lea.vmem %s0, %s168
        %p170 = pneg %p39
        %p171 = pneg %p36
        %p172 = pneg %p60
        %p173 = pneg %p57
        %p174 = pneg %p86
        %p175 = pneg %p83
        %p176 = scmp.lt.s32.totalorder %s18, 1
        %s177 = scalar_select %p176, %s18, 1
        %s178 = smul.addr %s177, 32
        %s179 = smul.addr %s178, 8
        %s180 = scalar_lea.vmem %s2, %s179
        %p181 = pneg %p107
        %p182 = pneg %p104
        %p183 = pneg %p128
        %p184 = pneg %p125
        %p185 = scmp.lt.s32.totalorder %s18, 1
        %s186 = scalar_select %p185, %s18, 1
        %s187 = smul.addr %s186, 32
        %s188 = smul.addr %s187, 8
        %s189 = scalar_lea.vmem %s0, %s188
        %p190 = scmp.lt.s32.totalorder %s18, 1
        %s191 = scalar_select %p190, %s18, 1
        %s192 = smul.addr %s191, 32
        %s193 = smul.addr %s192, 8
        %s194 = scalar_lea.vmem %s2, %s193
        %p195 = scmp.eq.s32.totalorder %s18, 0
        // Predicated region
        $region29: #{tpu_custom_call.1} parent=27 // pred_check
          %p196 = pneg %p195
        $region30: #{tpu_custom_call.1} parent=27 // pred_check_branch
          %198 = sbr.rel (%p196) target = $region32
        $region31: #{tpu_custom_call.1} parent=27 // pred_region
          %vm199 = vcmask 57344
          %200 = vst.msk [vmem:[#allocation2] sm:$0x1] %vm199, 0.0
          %201 = vst.msk [vmem:[#allocation4] sm:$0x1] %vm199, 0.0
        $region32: #{tpu_custom_call.1} parent=27 // pred_fallthru
          _
        %v202 = vld [vmem:[%s189] sm:$0xff]
        %v203 = vld [vmem:[%s189 + $0x8] sm:$0xff]
        %v204 = vld [vmem:[%s189 + $0x10] sm:$0xff]
        %v205 = vld [vmem:[%s189 + $0x18] sm:$0xff]
        %v206 = vld [vmem:[%s189 + $0x20] sm:$0xff]
        %v207 = vld [vmem:[%s189 + $0x28] sm:$0xff]
        %v208 = vld [vmem:[%s189 + $0x30] sm:$0xff]
        %v209 = vld [vmem:[%s189 + $0x38] sm:$0xff]
        %v210 = vld [vmem:[%s189 + $0x40] sm:$0xff]
        %v211 = vld [vmem:[%s189 + $0x48] sm:$0xff]
        %v212 = vld [vmem:[%s189 + $0x50] sm:$0xff]
        %v213 = vld [vmem:[%s189 + $0x58] sm:$0xff]
        %v214 = vld [vmem:[%s189 + $0x60] sm:$0xff]
        %v215 = vld [vmem:[%s189 + $0x68] sm:$0xff]
        %v216 = vld [vmem:[%s189 + $0x70] sm:$0xff]
        %v217 = vld [vmem:[%s189 + $0x78] sm:$0xff]
        %v218 = vld [vmem:[%s189 + $0x80] sm:$0xff]
        %v219 = vld [vmem:[%s189 + $0x88] sm:$0xff]
        %v220 = vld [vmem:[%s189 + $0x90] sm:$0xff]
        %v221 = vld [vmem:[%s189 + $0x98] sm:$0xff]
        %v222 = vld [vmem:[%s189 + $0xa0] sm:$0xff]
        %v223 = vld [vmem:[%s189 + $0xa8] sm:$0xff]
        %v224 = vld [vmem:[%s189 + $0xb0] sm:$0xff]
        %v225 = vld [vmem:[%s189 + $0xb8] sm:$0xff]
        %v226 = vld [vmem:[%s189 + $0xc0] sm:$0xff]
        %v227 = vld [vmem:[%s189 + $0xc8] sm:$0xff]
        %v228 = vld [vmem:[%s189 + $0xd0] sm:$0xff]
        %v229 = vld [vmem:[%s189 + $0xd8] sm:$0xff]
        %v230 = vld [vmem:[%s189 + $0xe0] sm:$0xff]
        %v231 = vld [vmem:[%s189 + $0xe8] sm:$0xff]
        %v232 = vld [vmem:[%s189 + $0xf0] sm:$0xff]
        %v233 = vld [vmem:[%s189 + $0xf8] sm:$0xff]
        %v234 = vld [vmem:[%s1] sm:$0xf]
        %vm235 = vcmask 31744
        %v237 = vsel %vm235, %v202, 0
        %v240 = vsel %vm235, %v203, 0
        %v243 = vsel %vm235, %v204, 0
        %v246 = vsel %vm235, %v205, 0
        %v249 = vsel %vm235, %v206, 0
        %v252 = vsel %vm235, %v207, 0
        %v255 = vsel %vm235, %v208, 0
        %v258 = vsel %vm235, %v209, 0
        %v261 = vsel %vm235, %v210, 0
        %v264 = vsel %vm235, %v211, 0
        %v267 = vsel %vm235, %v212, 0
        %v270 = vsel %vm235, %v213, 0
        %v273 = vsel %vm235, %v214, 0
        %v276 = vsel %vm235, %v215, 0
        %v279 = vsel %vm235, %v216, 0
        %v282 = vsel %vm235, %v217, 0
        %v285 = vsel %vm235, %v218, 0
        %v288 = vsel %vm235, %v219, 0
        %v291 = vsel %vm235, %v220, 0
        %v294 = vsel %vm235, %v221, 0
        %v297 = vsel %vm235, %v222, 0
        %v300 = vsel %vm235, %v223, 0
        %v303 = vsel %vm235, %v224, 0
        %v306 = vsel %vm235, %v225, 0
        %v309 = vsel %vm235, %v226, 0
        %v312 = vsel %vm235, %v227, 0
        %v315 = vsel %vm235, %v228, 0
        %v318 = vsel %vm235, %v229, 0
        %v321 = vsel %vm235, %v230, 0
        %v324 = vsel %vm235, %v231, 0
        %v327 = vsel %vm235, %v232, 0
        %v330 = vsel %vm235, %v233, 0
        %vm332 = vcmask 1043456
        %v334 = vsel %vm332, %v234, 0
        %336 = vmatprep.subr.mxu0 0.0
        %337 = vmatpush1.msra.mxu0 %v334
        %338 = vmatprep.subr.mxu0 0.0
        %339 = vmatpush1.msra.mxu0 0.0
        %340 = vmatprep.subr.mxu0 0.0
        %341 = vmatpush1.msra.mxu0 0.0
        %342 = vmatprep.subr.mxu0 0.0
        %343 = vmatpush1.msra.mxu0 0.0
        %344 = vmatprep.subr.mxu0 0.0
        %345 = vmatpush1.msra.mxu0 0.0
        %346 = vmatprep.subr.mxu0 0.0
        %347 = vmatpush1.msra.mxu0 0.0
        %348 = vmatprep.subr.mxu0 0.0
        %349 = vmatpush1.msra.mxu0 0.0
        %350 = vmatprep.subr.mxu0 0.0
        %351 = vmatpush1.msra.mxu0 0.0
        %352 = vmatprep.subr.mxu0 0.0
        %353 = vmatpush1.msra.mxu0 0.0
        %354 = vmatprep.subr.mxu0 0.0
        %355 = vmatpush1.msra.mxu0 0.0
        %356 = vmatprep.subr.mxu0 0.0
        %357 = vmatpush1.msra.mxu0 0.0
        %358 = vmatprep.subr.mxu0 0.0
        %359 = vmatpush1.msra.mxu0 0.0
        %360 = vmatprep.subr.mxu0 0.0
        %361 = vmatpush1.msra.mxu0 0.0
        %362 = vmatprep.subr.mxu0 0.0
        %363 = vmatpush1.msra.mxu0 0.0
        %364 = vmatprep.subr.mxu0 0.0
        %365 = vmatpush1.msra.mxu0 0.0
        %366 = vmatprep.subr.mxu0 0.0
        %367 = vmatpush1.msra.mxu0 0.0
        %368 = vmatprep.subr.mxu0 0.0
        %369 = vmatpush1.msra.mxu0 0.0
        %370 = vmatprep.subr.mxu0 0.0
        %371 = vmatpush1.msra.mxu0 0.0
        %372 = vmatprep.subr.mxu0 0.0
        %373 = vmatpush1.msra.mxu0 0.0
        %374 = vmatprep.subr.mxu0 0.0
        %375 = vmatpush1.msra.mxu0 0.0
        %376 = vmatprep.subr.mxu0 0.0
        %377 = vmatpush1.msra.mxu0 0.0
        %378 = vmatprep.subr.mxu0 0.0
        %379 = vmatpush1.msra.mxu0 0.0
        %380 = vmatprep.subr.mxu0 0.0
        %381 = vmatpush1.msra.mxu0 0.0
        %382 = vmatprep.subr.mxu0 0.0
        %383 = vmatpush1.msra.mxu0 0.0
        %384 = vmatprep.subr.mxu0 0.0
        %385 = vmatpush1.msra.mxu0 0.0
        %386 = vmatprep.subr.mxu0 0.0
        %387 = vmatpush1.msra.mxu0 0.0
        %388 = vmatprep.subr.mxu0 0.0
        %389 = vmatpush1.msra.mxu0 0.0
        %390 = vmatprep.subr.mxu0 0.0
        %391 = vmatpush1.msra.mxu0 0.0
        %392 = vmatprep.subr.mxu0 0.0
        %393 = vmatpush1.msra.mxu0 0.0
        %394 = vmatprep.subr.mxu0 0.0
        %395 = vmatpush1.msra.mxu0 0.0
        %396 = vmatprep.subr.mxu0 0.0
        %397 = vmatpush1.msra.mxu0 0.0
        %398 = vmatprep.subr.mxu0 0.0
        %399 = vmatpush1.msra.mxu0 0.0
        %400 = vmatprep.mubr.f32.mxu0 0.0
        %401 = vmatmul.mubr.f32.gmra.mrb[0].mxu0 %v237
        %v402 = vpop.f32.mrb[0].mxu0
        %v403 = vadd.f32 0.0, %v402
        %v404 = vpop.f32.mrb[0].mxu0
        %405 = vmatprep.mubr.f32.mxu0 0.0
        %406 = vmatmul.mubr.f32.gmra.mrb[0].mxu0 %v240
        %v407 = vpop.f32.mrb[0].mxu0
        %v408 = vadd.f32 0.0, %v407
        %v409 = vpop.f32.mrb[0].mxu0
        %410 = vmatprep.mubr.f32.mxu0 0.0
        %411 = vmatmul.mubr.f32.gmra.mrb[0].mxu0 %v243
        %v412 = vpop.f32.mrb[0].mxu0
        %v413 = vadd.f32 0.0, %v412
        %v414 = vpop.f32.mrb[0].mxu0
        %415 = vmatprep.mubr.f32.mxu0 0.0
        %416 = vmatmul.mubr.f32.gmra.mrb[0].mxu0 %v246
        %v417 = vpop.f32.mrb[0].mxu0
        %v418 = vadd.f32 0.0, %v417
        %v419 = vpop.f32.mrb[0].mxu0
        %420 = vmatprep.mubr.f32.mxu0 0.0
        %421 = vmatmul.mubr.f32.gmra.mrb[0].mxu0 %v249
        %v422 = vpop.f32.mrb[0].mxu0
        %v423 = vadd.f32 0.0, %v422
        %v424 = vpop.f32.mrb[0].mxu0
        %425 = vmatprep.mubr.f32.mxu0 0.0
        %426 = vmatmul.mubr.f32.gmra.mrb[0].mxu0 %v252
        %v427 = vpop.f32.mrb[0].mxu0
        %v428 = vadd.f32 0.0, %v427
        %v429 = vpop.f32.mrb[0].mxu0
        %430 = vmatprep.mubr.f32.mxu0 0.0
        %431 = vmatmul.mubr.f32.gmra.mrb[0].mxu0 %v255
        %v432 = vpop.f32.mrb[0].mxu0
        %v433 = vadd.f32 0.0, %v432
        %v434 = vpop.f32.mrb[0].mxu0
        %435 = vmatprep.mubr.f32.mxu0 0.0
        %436 = vmatmul.mubr.f32.gmra.mrb[0].mxu0 %v258
        %v437 = vpop.f32.mrb[0].mxu0
        %v438 = vadd.f32 0.0, %v437
        %v439 = vpop.f32.mrb[0].mxu0
        %440 = vmatprep.mubr.f32.mxu0 0.0
        %441 = vmatmul.mubr.f32.gmra.mrb[0].mxu0 %v261
        %v442 = vpop.f32.mrb[0].mxu0
        %v443 = vadd.f32 0.0, %v442
        %v444 = vpop.f32.mrb[0].mxu0
        %445 = vmatprep.mubr.f32.mxu0 0.0
        %446 = vmatmul.mubr.f32.gmra.mrb[0].mxu0 %v264
        %v447 = vpop.f32.mrb[0].mxu0
        %v448 = vadd.f32 0.0, %v447
        %v449 = vpop.f32.mrb[0].mxu0
        %450 = vmatprep.mubr.f32.mxu0 0.0
        %451 = vmatmul.mubr.f32.gmra.mrb[0].mxu0 %v267
        %v452 = vpop.f32.mrb[0].mxu0
        %v453 = vadd.f32 0.0, %v452
        %v454 = vpop.f32.mrb[0].mxu0
        %455 = vmatprep.mubr.f32.mxu0 0.0
        %456 = vmatmul.mubr.f32.gmra.mrb[0].mxu0 %v270
        %v457 = vpop.f32.mrb[0].mxu0
        %v458 = vadd.f32 0.0, %v457
        %v459 = vpop.f32.mrb[0].mxu0
        %460 = vmatprep.mubr.f32.mxu0 0.0
        %461 = vmatmul.mubr.f32.gmra.mrb[0].mxu0 %v273
        %v462 = vpop.f32.mrb[0].mxu0
        %v463 = vadd.f32 0.0, %v462
        %v464 = vpop.f32.mrb[0].mxu0
        %465 = vmatprep.mubr.f32.mxu0 0.0
        %466 = vmatmul.mubr.f32.gmra.mrb[0].mxu0 %v276
        %v467 = vpop.f32.mrb[0].mxu0
        %v468 = vadd.f32 0.0, %v467
        %v469 = vpop.f32.mrb[0].mxu0
        %470 = vmatprep.mubr.f32.mxu0 0.0
        %471 = vmatmul.mubr.f32.gmra.mrb[0].mxu0 %v279
        %v472 = vpop.f32.mrb[0].mxu0
        %v473 = vadd.f32 0.0, %v472
        %v474 = vpop.f32.mrb[0].mxu0
        %475 = vmatprep.mubr.f32.mxu0 0.0
        %476 = vmatmul.mubr.f32.gmra.mrb[0].mxu0 %v282
        %v477 = vpop.f32.mrb[0].mxu0
        %v478 = vadd.f32 0.0, %v477
        %v479 = vpop.f32.mrb[0].mxu0
        %480 = vmatprep.mubr.f32.mxu0 0.0
        %481 = vmatmul.mubr.f32.gmra.mrb[0].mxu0 %v285
        %v482 = vpop.f32.mrb[0].mxu0
        %v483 = vadd.f32 0.0, %v482
        %v484 = vpop.f32.mrb[0].mxu0
        %485 = vmatprep.mubr.f32.mxu0 0.0
        %486 = vmatmul.mubr.f32.gmra.mrb[0].mxu0 %v288
        %v487 = vpop.f32.mrb[0].mxu0
        %v488 = vadd.f32 0.0, %v487
        %v489 = vpop.f32.mrb[0].mxu0
        %490 = vmatprep.mubr.f32.mxu0 0.0
        %491 = vmatmul.mubr.f32.gmra.mrb[0].mxu0 %v291
        %v492 = vpop.f32.mrb[0].mxu0
        %v493 = vadd.f32 0.0, %v492
        %v494 = vpop.f32.mrb[0].mxu0
        %495 = vmatprep.mubr.f32.mxu0 0.0
        %496 = vmatmul.mubr.f32.gmra.mrb[0].mxu0 %v294
        %v497 = vpop.f32.mrb[0].mxu0
        %v498 = vadd.f32 0.0, %v497
        %v499 = vpop.f32.mrb[0].mxu0
        %500 = vmatprep.mubr.f32.mxu0 0.0
        %501 = vmatmul.mubr.f32.gmra.mrb[0].mxu0 %v297
        %v502 = vpop.f32.mrb[0].mxu0
        %v503 = vadd.f32 0.0, %v502
        %v504 = vpop.f32.mrb[0].mxu0
        %505 = vmatprep.mubr.f32.mxu0 0.0
        %506 = vmatmul.mubr.f32.gmra.mrb[0].mxu0 %v300
        %v507 = vpop.f32.mrb[0].mxu0
        %v508 = vadd.f32 0.0, %v507
        %v509 = vpop.f32.mrb[0].mxu0
        %510 = vmatprep.mubr.f32.mxu0 0.0
        %511 = vmatmul.mubr.f32.gmra.mrb[0].mxu0 %v303
        %v512 = vpop.f32.mrb[0].mxu0
        %v513 = vadd.f32 0.0, %v512
        %v514 = vpop.f32.mrb[0].mxu0
        %515 = vmatprep.mubr.f32.mxu0 0.0
        %516 = vmatmul.mubr.f32.gmra.mrb[0].mxu0 %v306
        %v517 = vpop.f32.mrb[0].mxu0
        %v518 = vadd.f32 0.0, %v517
        %v519 = vpop.f32.mrb[0].mxu0
        %520 = vmatprep.mubr.f32.mxu0 0.0
        %521 = vmatmul.mubr.f32.gmra.mrb[0].mxu0 %v309
        %v522 = vpop.f32.mrb[0].mxu0
        %v523 = vadd.f32 0.0, %v522
        %v524 = vpop.f32.mrb[0].mxu0
        %525 = vmatprep.mubr.f32.mxu0 0.0
        %526 = vmatmul.mubr.f32.gmra.mrb[0].mxu0 %v312
        %v527 = vpop.f32.mrb[0].mxu0
        %v528 = vadd.f32 0.0, %v527
        %v529 = vpop.f32.mrb[0].mxu0
        %530 = vmatprep.mubr.f32.mxu0 0.0
        %531 = vmatmul.mubr.f32.gmra.mrb[0].mxu0 %v315
        %v532 = vpop.f32.mrb[0].mxu0
        %v533 = vadd.f32 0.0, %v532
        %v534 = vpop.f32.mrb[0].mxu0
        %535 = vmatprep.mubr.f32.mxu0 0.0
        %536 = vmatmul.mubr.f32.gmra.mrb[0].mxu0 %v318
        %v537 = vpop.f32.mrb[0].mxu0
        %v538 = vadd.f32 0.0, %v537
        %v539 = vpop.f32.mrb[0].mxu0
        %540 = vmatprep.mubr.f32.mxu0 0.0
        %541 = vmatmul.mubr.f32.gmra.mrb[0].mxu0 %v321
        %v542 = vpop.f32.mrb[0].mxu0
        %v543 = vadd.f32 0.0, %v542
        %v544 = vpop.f32.mrb[0].mxu0
        %545 = vmatprep.mubr.f32.mxu0 0.0
        %546 = vmatmul.mubr.f32.gmra.mrb[0].mxu0 %v324
        %v547 = vpop.f32.mrb[0].mxu0
        %v548 = vadd.f32 0.0, %v547
        %v549 = vpop.f32.mrb[0].mxu0
        %550 = vmatprep.mubr.f32.mxu0 0.0
        %551 = vmatmul.mubr.f32.gmra.mrb[0].mxu0 %v327
        %v552 = vpop.f32.mrb[0].mxu0
        %v553 = vadd.f32 0.0, %v552
        %v554 = vpop.f32.mrb[0].mxu0
        %555 = vmatprep.mubr.f32.mxu0 0.0
        %556 = vmatmul.mubr.f32.gmra.mrb[0].mxu0 %v330
        %v557 = vpop.f32.mrb[0].mxu0
        %v558 = vadd.f32 0.0, %v557
        %v559 = vpop.f32.mrb[0].mxu0
        %560 = vdwg.mxu0
        %vm561 = vcmask 64512
        %562 = vst.msk [vmem:[%s194] sm:$0xff] %vm561, %v403
        %563 = vst.msk [vmem:[%s194 + $0x8] sm:$0xff] %vm561, %v408
        %564 = vst.msk [vmem:[%s194 + $0x10] sm:$0xff] %vm561, %v413
        %565 = vst.msk [vmem:[%s194 + $0x18] sm:$0xff] %vm561, %v418
        %566 = vst.msk [vmem:[%s194 + $0x20] sm:$0xff] %vm561, %v423
        %567 = vst.msk [vmem:[%s194 + $0x28] sm:$0xff] %vm561, %v428
        %568 = vst.msk [vmem:[%s194 + $0x30] sm:$0xff] %vm561, %v433
        %569 = vst.msk [vmem:[%s194 + $0x38] sm:$0xff] %vm561, %v438
        %570 = vst.msk [vmem:[%s194 + $0x40] sm:$0xff] %vm561, %v443
        %571 = vst.msk [vmem:[%s194 + $0x48] sm:$0xff] %vm561, %v448
        %572 = vst.msk [vmem:[%s194 + $0x50] sm:$0xff] %vm561, %v453
        %573 = vst.msk [vmem:[%s194 + $0x58] sm:$0xff] %vm561, %v458
        %574 = vst.msk [vmem:[%s194 + $0x60] sm:$0xff] %vm561, %v463
        %575 = vst.msk [vmem:[%s194 + $0x68] sm:$0xff] %vm561, %v468
        %576 = vst.msk [vmem:[%s194 + $0x70] sm:$0xff] %vm561, %v473
        %577 = vst.msk [vmem:[%s194 + $0x78] sm:$0xff] %vm561, %v478
        %578 = vst.msk [vmem:[%s194 + $0x80] sm:$0xff] %vm561, %v483
        %579 = vst.msk [vmem:[%s194 + $0x88] sm:$0xff] %vm561, %v488
        %580 = vst.msk [vmem:[%s194 + $0x90] sm:$0xff] %vm561, %v493
        %581 = vst.msk [vmem:[%s194 + $0x98] sm:$0xff] %vm561, %v498
        %582 = vst.msk [vmem:[%s194 + $0xa0] sm:$0xff] %vm561, %v503
        %583 = vst.msk [vmem:[%s194 + $0xa8] sm:$0xff] %vm561, %v508
        %584 = vst.msk [vmem:[%s194 + $0xb0] sm:$0xff] %vm561, %v513
        %585 = vst.msk [vmem:[%s194 + $0xb8] sm:$0xff] %vm561, %v518
        %586 = vst.msk [vmem:[%s194 + $0xc0] sm:$0xff] %vm561, %v523
        %587 = vst.msk [vmem:[%s194 + $0xc8] sm:$0xff] %vm561, %v528
        %588 = vst.msk [vmem:[%s194 + $0xd0] sm:$0xff] %vm561, %v533
        %589 = vst.msk [vmem:[%s194 + $0xd8] sm:$0xff] %vm561, %v538
        %590 = vst.msk [vmem:[%s194 + $0xe0] sm:$0xff] %vm561, %v543
        %591 = vst.msk [vmem:[%s194 + $0xe8] sm:$0xff] %vm561, %v548
        %592 = vst.msk [vmem:[%s194 + $0xf0] sm:$0xff] %vm561, %v553
        %593 = vst.msk [vmem:[%s194 + $0xf8] sm:$0xff] %vm561, %v558
        %v594 = vld [vmem:[#allocation2] sm:$0x1]
        %v595 = vsel %vm561, %v403, 0.0
        %v596 = vsel %vm561, %v408, 0.0
        %v597 = vadd.f32 %v595, %v596
        %v598 = vsel %vm561, %v413, 0.0
        %v599 = vadd.f32 %v597, %v598
        %v600 = vsel %vm561, %v418, 0.0
        %v601 = vadd.f32 %v599, %v600
        %v602 = vsel %vm561, %v423, 0.0
        %v603 = vadd.f32 %v601, %v602
        %v604 = vsel %vm561, %v428, 0.0
        %v605 = vadd.f32 %v603, %v604
        %v606 = vsel %vm561, %v433, 0.0
        %v607 = vadd.f32 %v605, %v606
        %v608 = vsel %vm561, %v438, 0.0
        %v609 = vadd.f32 %v607, %v608
        %v610 = vsel %vm561, %v443, 0.0
        %v611 = vadd.f32 %v609, %v610
        %v612 = vsel %vm561, %v448, 0.0
        %v613 = vadd.f32 %v611, %v612
        %v614 = vsel %vm561, %v453, 0.0
        %v615 = vadd.f32 %v613, %v614
        %v616 = vsel %vm561, %v458, 0.0
        %v617 = vadd.f32 %v615, %v616
        %v618 = vsel %vm561, %v463, 0.0
        %v619 = vadd.f32 %v617, %v618
        %v620 = vsel %vm561, %v468, 0.0
        %v621 = vadd.f32 %v619, %v620
        %v622 = vsel %vm561, %v473, 0.0
        %v623 = vadd.f32 %v621, %v622
        %v624 = vsel %vm561, %v478, 0.0
        %v625 = vadd.f32 %v623, %v624
        %v626 = vsel %vm561, %v483, 0.0
        %v627 = vadd.f32 %v625, %v626
        %v628 = vsel %vm561, %v488, 0.0
        %v629 = vadd.f32 %v627, %v628
        %v630 = vsel %vm561, %v493, 0.0
        %v631 = vadd.f32 %v629, %v630
        %v632 = vsel %vm561, %v498, 0.0
        %v633 = vadd.f32 %v631, %v632
        %v634 = vsel %vm561, %v503, 0.0
        %v635 = vadd.f32 %v633, %v634
        %v636 = vsel %vm561, %v508, 0.0
        %v637 = vadd.f32 %v635, %v636
        %v638 = vsel %vm561, %v513, 0.0
        %v639 = vadd.f32 %v637, %v638
        %v640 = vsel %vm561, %v518, 0.0
        %v641 = vadd.f32 %v639, %v640
        %v642 = vsel %vm561, %v523, 0.0
        %v643 = vadd.f32 %v641, %v642
        %v644 = vsel %vm561, %v528, 0.0
        %v645 = vadd.f32 %v643, %v644
        %v646 = vsel %vm561, %v533, 0.0
        %v647 = vadd.f32 %v645, %v646
        %v648 = vsel %vm561, %v538, 0.0
        %v649 = vadd.f32 %v647, %v648
        %v650 = vsel %vm561, %v543, 0.0
        %v651 = vadd.f32 %v649, %v650
        %v652 = vsel %vm561, %v548, 0.0
        %v653 = vadd.f32 %v651, %v652
        %v654 = vsel %vm561, %v553, 0.0
        %v655 = vadd.f32 %v653, %v654
        %v656 = vsel %vm561, %v558, 0.0
        %v657 = vadd.f32 %v655, %v656
        %v658 = vrot.slane %v657, 4
        %v659 = vadd.f32 %v657, %v658
        %v660 = vrot.slane %v659, 2
        %v661 = vadd.f32 %v659, %v660
        %v662 = vrot.slane %v661, 1
        %v663 = vadd.f32 %v661, %v662
        %v664 = vadd.f32 %v594, %v663
        %vm665 = vcmask 57344
        %666 = vst.msk [vmem:[#allocation2] sm:$0x1] %vm665, %v664
        %v667 = vld [vmem:[#allocation4] sm:$0x1]
        %v668 = vmul.f32 %v403, %v403
        %v669 = vmul.f32 %v408, %v408
        %v670 = vmul.f32 %v413, %v413
        %v671 = vmul.f32 %v418, %v418
        %v672 = vmul.f32 %v423, %v423
        %v673 = vmul.f32 %v428, %v428
        %v674 = vmul.f32 %v433, %v433
        %v675 = vmul.f32 %v438, %v438
        %v676 = vmul.f32 %v443, %v443
        %v677 = vmul.f32 %v448, %v448
        %v678 = vmul.f32 %v453, %v453
        %v679 = vmul.f32 %v458, %v458
        %v680 = vmul.f32 %v463, %v463
        %v681 = vmul.f32 %v468, %v468
        %v682 = vmul.f32 %v473, %v473
        %v683 = vmul.f32 %v478, %v478
        %v684 = vmul.f32 %v483, %v483
        %v685 = vmul.f32 %v488, %v488
        %v686 = vmul.f32 %v493, %v493
        %v687 = vmul.f32 %v498, %v498
        %v688 = vmul.f32 %v503, %v503
        %v689 = vmul.f32 %v508, %v508
        %v690 = vmul.f32 %v513, %v513
        %v691 = vmul.f32 %v518, %v518
        %v692 = vmul.f32 %v523, %v523
        %v693 = vmul.f32 %v528, %v528
        %v694 = vmul.f32 %v533, %v533
        %v695 = vmul.f32 %v538, %v538
        %v696 = vmul.f32 %v543, %v543
        %v697 = vmul.f32 %v548, %v548
        %v698 = vmul.f32 %v553, %v553
        %v699 = vmul.f32 %v558, %v558
        %v700 = vsel %vm561, %v668, 0.0
        %v701 = vsel %vm561, %v669, 0.0
        %v702 = vadd.f32 %v700, %v701
        %v703 = vsel %vm561, %v670, 0.0
        %v704 = vadd.f32 %v702, %v703
        %v705 = vsel %vm561, %v671, 0.0
        %v706 = vadd.f32 %v704, %v705
        %v707 = vsel %vm561, %v672, 0.0
        %v708 = vadd.f32 %v706, %v707
        %v709 = vsel %vm561, %v673, 0.0
        %v710 = vadd.f32 %v708, %v709
        %v711 = vsel %vm561, %v674, 0.0
        %v712 = vadd.f32 %v710, %v711
        %v713 = vsel %vm561, %v675, 0.0
        %v714 = vadd.f32 %v712, %v713
        %v715 = vsel %vm561, %v676, 0.0
        %v716 = vadd.f32 %v714, %v715
        %v717 = vsel %vm561, %v677, 0.0
        %v718 = vadd.f32 %v716, %v717
        %v719 = vsel %vm561, %v678, 0.0
        %v720 = vadd.f32 %v718, %v719
        %v721 = vsel %vm561, %v679, 0.0
        %v722 = vadd.f32 %v720, %v721
        %v723 = vsel %vm561, %v680, 0.0
        %v724 = vadd.f32 %v722, %v723
        %v725 = vsel %vm561, %v681, 0.0
        %v726 = vadd.f32 %v724, %v725
        %v727 = vsel %vm561, %v682, 0.0
        %v728 = vadd.f32 %v726, %v727
        %v729 = vsel %vm561, %v683, 0.0
        %v730 = vadd.f32 %v728, %v729
        %v731 = vsel %vm561, %v684, 0.0
        %v732 = vadd.f32 %v730, %v731
        %v733 = vsel %vm561, %v685, 0.0
        %v734 = vadd.f32 %v732, %v733
        %v735 = vsel %vm561, %v686, 0.0
        %v736 = vadd.f32 %v734, %v735
        %v737 = vsel %vm561, %v687, 0.0
        %v738 = vadd.f32 %v736, %v737
        %v739 = vsel %vm561, %v688, 0.0
        %v740 = vadd.f32 %v738, %v739
        %v741 = vsel %vm561, %v689, 0.0
        %v742 = vadd.f32 %v740, %v741
        %v743 = vsel %vm561, %v690, 0.0
        %v744 = vadd.f32 %v742, %v743
        %v745 = vsel %vm561, %v691, 0.0
        %v746 = vadd.f32 %v744, %v745
        %v747 = vsel %vm561, %v692, 0.0
        %v748 = vadd.f32 %v746, %v747
        %v749 = vsel %vm561, %v693, 0.0
        %v750 = vadd.f32 %v748, %v749
        %v751 = vsel %vm561, %v694, 0.0
        %v752 = vadd.f32 %v750, %v751
        %v753 = vsel %vm561, %v695, 0.0
        %v754 = vadd.f32 %v752, %v753
        %v755 = vsel %vm561, %v696, 0.0
        %v756 = vadd.f32 %v754, %v755
        %v757 = vsel %vm561, %v697, 0.0
        %v758 = vadd.f32 %v756, %v757
        %v759 = vsel %vm561, %v698, 0.0
        %v760 = vadd.f32 %v758, %v759
        %v761 = vsel %vm561, %v699, 0.0
        %v762 = vadd.f32 %v760, %v761
        %v763 = vrot.slane %v762, 4
        %v764 = vadd.f32 %v762, %v763
        %v765 = vrot.slane %v764, 2
        %v766 = vadd.f32 %v764, %v765
        %v767 = vrot.slane %v766, 1
        %v768 = vadd.f32 %v766, %v767
        %v769 = vadd.f32 %v667, %v768
        %770 = vst.msk [vmem:[#allocation4] sm:$0x1] %vm665, %v769
        %p771 = scmp.lt.s32.totalorder %s18, 1
        %s772 = scalar_select %p771, %s18, 1
        %s773 = smul.addr %s772, 32
        %s774 = smul.addr %s773, 8
        %s775 = scalar_lea.vmem %s2, %s774
        // Predicated region
        $region33: #{tpu_custom_call.1} parent=27 // pred_check
          %p776 = pneg %p83
        $region34: #{tpu_custom_call.1} parent=27 // pred_check_branch
          %778 = sbr.rel (%p776) target = $region36
        $region35: #{tpu_custom_call.1} parent=27 // pred_region
          _
        $region36: #{tpu_custom_call.1} parent=27 // pred_fallthru
          _
        // Predicated region
        $region37: #{tpu_custom_call.1} parent=27 // pred_check
          %p779 = pneg %p104
        $region38: #{tpu_custom_call.1} parent=27 // pred_check_branch
          %781 = sbr.rel (%p779) target = $region40
        $region39: #{tpu_custom_call.1} parent=27 // pred_region
          %s783 = ssub.s32 16, 16
          %784 = vsyncadd [#allocation3], %s783
          %s786 = sshll.u32 [#allocation2], 4
          %s787 = int_to_ptr.vmem [resolvable:$true] %s786
          %789 = dma.vmem_to_hbm [thread:$0]  %s787, 16, %s3, [#allocation3]
        $region40: #{tpu_custom_call.1} parent=27 // pred_fallthru
          _
        // Predicated region
        $region41: #{tpu_custom_call.1} parent=27 // pred_check
          %p790 = pneg %p125
        $region42: #{tpu_custom_call.1} parent=27 // pred_check_branch
          %792 = sbr.rel (%p790) target = $region44
        $region43: #{tpu_custom_call.1} parent=27 // pred_region
          %s794 = ssub.s32 16, 16
          %795 = vsyncadd [#allocation5], %s794
          %s797 = sshll.u32 [#allocation4], 4
          %s798 = int_to_ptr.vmem [resolvable:$true] %s797
          %800 = dma.vmem_to_hbm [thread:$0]  %s798, 16, %s4, [#allocation5]
        $region44: #{tpu_custom_call.1} parent=27 // pred_fallthru
          _
        // Predicated region
        $region45: #{tpu_custom_call.1} parent=27 // pred_check
          %p801 = pneg %p104
        $region46: #{tpu_custom_call.1} parent=27 // pred_check_branch
          %803 = sbr.rel (%p801) target = $region48
        $region47: #{tpu_custom_call.1} parent=27 // pred_region
          %804 = dma.done [#allocation3], 16
        $region48: #{tpu_custom_call.1} parent=27 // pred_fallthru
          _
        // Predicated region
        $region49: #{tpu_custom_call.1} parent=27 // pred_check
          %p805 = pneg %p125
        $region50: #{tpu_custom_call.1} parent=27 // pred_check_branch
          %807 = sbr.rel (%p805) target = $region52
        $region51: #{tpu_custom_call.1} parent=27 // pred_region
          %808 = dma.done [#allocation5], 16
        $region52: #{tpu_custom_call.1} parent=27 // pred_fallthru
          _
      $region28: #{tpu_custom_call.1} parent=5 // pred_fallthru
        _
      %p809 = scmp.le.s32.totalorder 2, %s13
      // Predicated region
      $region53: #{tpu_custom_call.1} parent=5 // pred_check
        %p810 = pneg %p809
      $region54: #{tpu_custom_call.1} parent=5 // pred_check_branch
        %812 = sbr.rel (%p810) target = $region56
      $region55: #{tpu_custom_call.1} parent=5 // pred_region
        %s813 = ssub.s32 %s13, 2
        // Predicated region
        $region57: #{tpu_custom_call.1} parent=55 // pred_check
          %p814 = pneg %p89
        $region58: #{tpu_custom_call.1} parent=55 // pred_check_branch
          %816 = sbr.rel (%p814) target = $region60
        $region59: #{tpu_custom_call.1} parent=55 // pred_region
          %p817 = scmp.lt.s32.totalorder %s19, 1
          %s818 = scalar_select %p817, %s19, 1
          %s819 = smul.addr %s818, 32
          %s820 = smul.addr %s819, 8
          %s821 = scalar_lea.vmem %s2, %s820
        $region60: #{tpu_custom_call.1} parent=55 // pred_fallthru
          _
      $region56: #{tpu_custom_call.1} parent=5 // pred_fallthru
        _
    $region6: #{tpu_custom_call.1} parent=1 // loop_footer
      %s17 = sadd.s32 1, %s13
    $region7: #{tpu_custom_call.1} parent=1 // loop_footer_branch
      %12 = sbr.rel target = $region3
    $region8: #{tpu_custom_call.1} parent=1 // loop_exit
      _
    %822 = vsyncpa [#allocation3], 1
    %s823 = scalar_lea.sflag [#allocation3], 1
    %824 = vsyncpa %s823, 1
    %825 = vsyncpa [#allocation5], 1

</llo_original>
